<compile_context>
chip_gen: v7x
topology: tpu7x:2x2x1
jax: 0.10.0
libtpu: 0.0.40
codegen_flags: <defaults>
</compile_context>

<pallas_src>
import jax
import jax.numpy as jnp
from jax.experimental import pallas as pl
from jax.experimental.pallas import tpu as pltpu


def _scaled_matmul_kernel(scale_ref, a_ref, b_ref, o_ref, acc_ref):
    """Multi-K-step kernel: accumulate in f32 scratch, finalize on last step."""
    k = pl.program_id(2)

    @pl.when(k == 0)
    def _():
        acc_ref[...] = jnp.zeros_like(acc_ref)

    acc_ref[...] += jnp.dot(
        a_ref[...], b_ref[...], preferred_element_type=jnp.float32
    )

    @pl.when(k == pl.num_programs(2) - 1)
    def _():
        o_ref[...] = (scale_ref[0] * acc_ref[...]).astype(o_ref.dtype)


def _scaled_matmul_single_k_kernel(scale_ref, a_ref, b_ref, o_ref):
    """Single-K-step kernel: no scratch accumulator, write output directly."""
    acc = jnp.dot(a_ref[...], b_ref[...], preferred_element_type=jnp.float32)
    o_ref[...] = (scale_ref[0] * acc).astype(o_ref.dtype)


def _round_up(x, m):
    return ((x + m - 1) // m) * m


def scaled_matmul(a, b, scale=1.0, *, tm=None, tn=None, tk=None):
    """meta(A, B) = scale * (A @ B), computed by a tiled Pallas TPU kernel."""
    M, K = a.shape
    K2, N = b.shape
    assert K == K2, (a.shape, b.shape)
    out_dtype = a.dtype

    # Tile selection.  A dimension that fits within the cap uses its FULL
    # extent as the block size (legal regardless of (8,128) alignment), so
    # small / ragged problems need no padding at all.  Only dimensions larger
    # than the cap are tiled (caps are (8,128)-aligned).
    if tm is None:
        tm = M if M <= 256 else 256
    if tn is None:
        tn = N if N <= 256 else 256
    if tk is None:
        tk = K if K <= 512 else 512
    tm, tn, tk = min(tm, M), min(tn, N), min(tk, K)

    Mp = M if tm == M else _round_up(M, tm)
    Kp = K if tk == K else _round_up(K, tk)
    Np = N if tn == N else _round_up(N, tn)

    a_p = a if (Mp, Kp) == (M, K) else jnp.pad(a, ((0, Mp - M), (0, Kp - K)))
    b_p = b if (Kp, Np) == (K, N) else jnp.pad(b, ((0, Kp - K), (0, Np - N)))

    scale_arr = jnp.asarray(scale, dtype=jnp.float32).reshape((1,))

    mt, nt, kt = Mp // tm, Np // tn, Kp // tk

    itemsize = jnp.dtype(out_dtype).itemsize
    cost = pl.CostEstimate(
        flops=2 * M * K * N,
        transcendentals=0,
        bytes_accessed=(a.size * a.dtype.itemsize
                        + b.size * b.dtype.itemsize
                        + M * N * itemsize),
    )

    if kt == 1:
        # Whole K axis in one block: no accumulator scratch needed.
        out = pl.pallas_call(
            _scaled_matmul_single_k_kernel,
            out_shape=jax.ShapeDtypeStruct((Mp, Np), out_dtype),
            grid_spec=pltpu.PrefetchScalarGridSpec(
                num_scalar_prefetch=1,
                grid=(mt, nt),
                in_specs=[
                    pl.BlockSpec((tm, tk), lambda i, j, s: (i, 0)),
                    pl.BlockSpec((tk, tn), lambda i, j, s: (0, j)),
                ],
                out_specs=pl.BlockSpec((tm, tn), lambda i, j, s: (i, j)),
            ),
            compiler_params=pltpu.CompilerParams(
                dimension_semantics=("parallel", "parallel"),
            ),
            cost_estimate=cost,
        )(scale_arr, a_p, b_p)
    else:
        out = pl.pallas_call(
            _scaled_matmul_kernel,
            out_shape=jax.ShapeDtypeStruct((Mp, Np), out_dtype),
            grid_spec=pltpu.PrefetchScalarGridSpec(
                num_scalar_prefetch=1,
                grid=(mt, nt, kt),
                in_specs=[
                    pl.BlockSpec((tm, tk), lambda i, j, k, s: (i, k)),
                    pl.BlockSpec((tk, tn), lambda i, j, k, s: (k, j)),
                ],
                out_specs=pl.BlockSpec((tm, tn), lambda i, j, k, s: (i, j)),
                scratch_shapes=[pltpu.VMEM((tm, tn), jnp.float32)],
            ),
            compiler_params=pltpu.CompilerParams(
                dimension_semantics=("parallel", "parallel", "arbitrary"),
            ),
            cost_estimate=cost,
        )(scale_arr, a_p, b_p)

    if (Mp, Np) != (M, N):
        out = out[:M, :N]
    return out


class Unconditional:
    """JAX port of zuko.flows.Unconditional.

    Registers positional arrays (as "parameters" or "buffers"), stores kwargs,
    and on forward evaluates meta(*parameters, *buffers, **kwargs).  The input
    `y` is ignored, exactly as in the PyTorch module.
    """

    def __init__(self, meta, *args, buffer: bool = False, **kwargs):
        self.meta = meta
        if buffer:
            self._parameters = ()
            self._buffers = tuple(args)
        else:
            self._parameters = tuple(args)
            self._buffers = ()
        self.kwargs = kwargs

    def forward(self, y=None):
        return self.meta(*self._parameters, *self._buffers, **self.kwargs)

    __call__ = forward


if __name__ == "__main__":
    key = jax.random.PRNGKey(0)
    ka, kb, kc, kd, ke, kf = jax.random.split(key, 6)

    # --- demo 1: tile-friendly shape, single-K-step fast path ---------------
    M, K, N = 32, 128, 128
    A = jax.random.normal(ka, (M, K), dtype=jnp.float32)
    B = jax.random.normal(kb, (K, N), dtype=jnp.float32)

    module = Unconditional(scaled_matmul, A, B, scale=0.5)
    out = jax.block_until_ready(module(None))   # forward ignores y

    ref = 0.5 * (A @ B)
    assert out.shape == (M, N) and out.dtype == jnp.float32
    assert jnp.allclose(out, ref, atol=1e-4, rtol=1e-4), "mismatch vs reference"

    # --- demo 2: ragged shape, runs as a single un-padded full-extent block -
    M2, K2, N2 = 20, 96, 160
    A2 = jax.random.normal(kc, (M2, K2), dtype=jnp.float32)
    B2 = jax.random.normal(kd, (K2, N2), dtype=jnp.float32)

    module2 = Unconditional(scaled_matmul, A2, B2, scale=2.0)
    out2 = jax.block_until_ready(module2(None))

    ref2 = 2.0 * (A2 @ B2)
    assert out2.shape == (M2, N2) and out2.dtype == jnp.float32
    assert jnp.allclose(out2, ref2, atol=1e-4, rtol=1e-4), "mismatch (ragged)"

    # --- demo 3: explicit tiles exercising the multi-K accumulator path -----
    M3, K3, N3 = 16, 256, 128
    A3 = jax.random.normal(ke, (M3, K3), dtype=jnp.float32)
    B3 = jax.random.normal(kf, (K3, N3), dtype=jnp.float32)

    module3 = Unconditional(scaled_matmul, A3, B3, scale=1.5, tk=128)
    out3 = jax.block_until_ready(module3(None))

    ref3 = 1.5 * (A3 @ B3)
    assert out3.shape == (M3, N3) and out3.dtype == jnp.float32
    assert jnp.allclose(out3, ref3, atol=1e-4, rtol=1e-4), "mismatch (multi-K)"

    print("KERNEL_OK")
</pallas_src>

<mosaic_0001>
module attributes {stable_mosaic.version = 11 : i64} {
  func.func @_scaled_matmul_single_k_kernel(%arg0: i32, %arg1: i32, %arg2: memref<1xf32, #tpu.memory_space<smem>>, %arg3: memref<32x128xf32, #tpu.memory_space<vmem>>, %arg4: memref<128x128xf32, #tpu.memory_space<vmem>>, %arg5: memref<32x128xf32, #tpu.memory_space<vmem>>) attributes {dimension_semantics = [#tpu.dimension_semantics<parallel>, #tpu.dimension_semantics<parallel>], iteration_bounds = array<i64: 1, 1>, scalar_prefetch = 1 : i64, scratch_operands = 0 : i64, tpu.core_type = #tpu.core_type<tc>, window_params = [{transform_indices = @transform_0, window_bounds = array<i64: 32, 128>}, {transform_indices = @transform_1, window_bounds = array<i64: 128, 128>}, {transform_indices = @transform_2, window_bounds = array<i64: 32, 128>}]} {
    %c0 = arith.constant 0 : index
    %c0_0 = arith.constant 0 : index
    %0 = vector.load %arg3[%c0, %c0_0] : memref<32x128xf32, #tpu.memory_space<vmem>>, vector<32x128xf32>
    %c0_1 = arith.constant 0 : index
    %c0_2 = arith.constant 0 : index
    %1 = vector.load %arg4[%c0_1, %c0_2] : memref<128x128xf32, #tpu.memory_space<vmem>>, vector<128x128xf32>
    %cst = arith.constant dense<0.000000e+00> : vector<32x128xf32>
    %2 = tpu.matmul %0, %1, %cst {dimension_numbers = #tpu.dot_dimension_numbers<[1], [0], [0], [1], [0, 0, 1, 1], [], []>} : vector<32x128xf32>, vector<128x128xf32>, vector<32x128xf32> -> vector<32x128xf32>
    %c0_3 = arith.constant 0 : index
    %3 = memref.load %arg2[%c0_3] : memref<1xf32, #tpu.memory_space<smem>>
    %4 = vector.broadcast %3 : f32 to vector<32x128xf32>
    %5 = arith.mulf %4, %2 : vector<32x128xf32>
    %c0_4 = arith.constant 0 : index
    %c0_5 = arith.constant 0 : index
    %6 = vector.load %arg5[%c0_4, %c0_5] : memref<32x128xf32, #tpu.memory_space<vmem>>, vector<32x128xf32>
    tpu.vector_store %arg5[%c0_4, %c0_5], %5 {strides = array<i32>} : memref<32x128xf32, #tpu.memory_space<vmem>>, vector<32x128xf32>,
    return
  }
  func.func @transform_0(%arg0: i32, %arg1: i32, %arg2: memref<1xf32, #tpu.memory_space<smem>>) -> (i32, i32) {
    %c0_i32 = arith.constant 0 : i32
    %c0_i32_0 = arith.constant 0 : i32
    return %arg0, %c0_i32 : i32, i32
  }
  func.func @transform_1(%arg0: i32, %arg1: i32, %arg2: memref<1xf32, #tpu.memory_space<smem>>) -> (i32, i32) {
    %c0_i32 = arith.constant 0 : i32
    %c0_i32_0 = arith.constant 0 : i32
    return %c0_i32, %arg1 : i32, i32
  }
  func.func @transform_2(%arg0: i32, %arg1: i32, %arg2: memref<1xf32, #tpu.memory_space<smem>>) -> (i32, i32) {
    %c0_i32 = arith.constant 0 : i32
    return %arg0, %arg1 : i32, i32
  }
}

</mosaic_0001>

<llo_original>
// kernel: tpu_custom_call.1
$region0: #{tpu_custom_call.1}
  #allocation0 [shape = 'u32[]', space=smem, size = 0x4, offset = 0x4, fixed_abs, tag = 'smem constant byte address 0x4 - core index']
  #allocation1 [shape = 'u32[144,128]{1,0:T(1,128)}', space=vmem, size = 0x12000, scoped, tag = 'internal scratch']
  #allocation2 [shape = 's32[1]{0}', space=sflag, size = 0x4, scoped, tag = 'scoped memory for tpu_custom_call.1']
  #allocation3 [shape = 'f32[1]{0:T(128)S(6)}', space=smem, size = 0x200, scoped, tag = 'prefetched SMEM operand 0']
  %s0 = inlined_call_operand.<no memory space> [shape: f32[1], index: 0, kind: input, shape index: {}]
  %s1 = inlined_call_operand.hbm [shape: f32[32,128], index: 1, kind: input, shape index: {}]
  %s2 = inlined_call_operand.hbm [shape: f32[128,128], index: 2, kind: input, shape index: {}]
  %s3 = inlined_call_operand.hbm [shape: f32[32,128], index: 3, kind: output, shape index: {}]
  %s4 = sld [smem:[#allocation0]]
  $region26: #{tpu_custom_call.1} parent=0
    _
  %s6 = ssub.s32 1, %s4
  %s7 = scalar_select 0, %s6, %s4
  %8 = sst [smem:[#allocation3]] %s0
  $region1: #{tpu_custom_call.1} parent=0
    #allocation4 [shape = 'u8[16384]{0}', space=vmem, size = 0x4000, scoped, tag = 'input window, operand 1, single buffered']
    #allocation5 [shape = 's32[1]{0}', space=sflag, size = 0x4, scoped, tag = 'scoped memory for tpu_custom_call.1']
    #allocation6 [shape = 's32[1]{0}', space=sflag, size = 0x4, scoped, tag = 'scoped memory for tpu_custom_call.1']
    #allocation7 [shape = 'u8[65536]{0}', space=vmem, size = 0x10000, scoped, tag = 'input window, operand 2, single buffered']
    #allocation8 [shape = 's32[1]{0}', space=sflag, size = 0x4, scoped, tag = 'scoped memory for tpu_custom_call.1']
    #allocation9 [shape = 'u8[16384]{0}', space=vmem, size = 0x4000, scoped, tag = 'output window, operand 0, single buffered']
    %9 = vsyncpa [#allocation5], 0
    %10 = vsyncpa [#allocation8], 0
    %11 = vsyncpa [#allocation6], 0
    // Predicated region
    $region2: #{tpu_custom_call.1} parent=1 // pred_check
      _
    $region3: #{tpu_custom_call.1} parent=1 // pred_check_branch
      %13 = sbr.rel (0) target = $region5
    $region4: #{tpu_custom_call.1} parent=1 // pred_region
      %s15 = ssub.s32 512, 512
      %16 = vsyncadd [#allocation5], %s15
      %s17 = sshll.u32 [#allocation4], 4
      %s18 = int_to_ptr.vmem [resolvable:$true] %s17
      %23 = dma.hbm_to_vmem [thread:$0]  %s1, 512, %s18, [#allocation5], 128, 128, 8
    $region5: #{tpu_custom_call.1} parent=1 // pred_fallthru
      _
    // Predicated region
    $region6: #{tpu_custom_call.1} parent=1 // pred_check
      _
    $region7: #{tpu_custom_call.1} parent=1 // pred_check_branch
      %25 = sbr.rel (0) target = $region9
    $region8: #{tpu_custom_call.1} parent=1 // pred_region
      %s27 = ssub.s32 2048, 2048
      %28 = vsyncadd [#allocation8], %s27
      %s29 = sshll.u32 [#allocation7], 4
      %s30 = int_to_ptr.vmem [resolvable:$true] %s29
      %35 = dma.hbm_to_vmem [thread:$0]  %s2, 2048, %s30, [#allocation8], 128, 128, 8
    $region9: #{tpu_custom_call.1} parent=1 // pred_fallthru
      _
    // Predicated region
    $region10: #{tpu_custom_call.1} parent=1 // pred_check
      _
    $region11: #{tpu_custom_call.1} parent=1 // pred_check_branch
      %37 = sbr.rel (0) target = $region13
    $region12: #{tpu_custom_call.1} parent=1 // pred_region
      %38 = dma.done [#allocation5], 512
    $region13: #{tpu_custom_call.1} parent=1 // pred_fallthru
      _
    // Predicated region
    $region14: #{tpu_custom_call.1} parent=1 // pred_check
      _
    $region15: #{tpu_custom_call.1} parent=1 // pred_check_branch
      %40 = sbr.rel (0) target = $region17
    $region16: #{tpu_custom_call.1} parent=1 // pred_region
      %41 = dma.done [#allocation8], 2048
    $region17: #{tpu_custom_call.1} parent=1 // pred_fallthru
      _
    %v42 = vld [vmem:[#allocation4] sm:$0xff]
    %v43 = vld [vmem:[#allocation4 + $0x8] sm:$0xff]
    %v44 = vld [vmem:[#allocation4 + $0x10] sm:$0xff]
    %v45 = vld [vmem:[#allocation4 + $0x18] sm:$0xff]
    %v46 = vld [vmem:[#allocation7] sm:$0xff]
    %v47 = vld [vmem:[#allocation7 + $0x8] sm:$0xff]
    %v48 = vld [vmem:[#allocation7 + $0x10] sm:$0xff]
    %v49 = vld [vmem:[#allocation7 + $0x18] sm:$0xff]
    %v50 = vld [vmem:[#allocation7 + $0x20] sm:$0xff]
    %v51 = vld [vmem:[#allocation7 + $0x28] sm:$0xff]
    %v52 = vld [vmem:[#allocation7 + $0x30] sm:$0xff]
    %v53 = vld [vmem:[#allocation7 + $0x38] sm:$0xff]
    %v54 = vld [vmem:[#allocation7 + $0x40] sm:$0xff]
    %v55 = vld [vmem:[#allocation7 + $0x48] sm:$0xff]
    %v56 = vld [vmem:[#allocation7 + $0x50] sm:$0xff]
    %v57 = vld [vmem:[#allocation7 + $0x58] sm:$0xff]
    %v58 = vld [vmem:[#allocation7 + $0x60] sm:$0xff]
    %v59 = vld [vmem:[#allocation7 + $0x68] sm:$0xff]
    %v60 = vld [vmem:[#allocation7 + $0x70] sm:$0xff]
    %v61 = vld [vmem:[#allocation7 + $0x78] sm:$0xff]
    %62 = vmatprep.subr.mxu0 0.0
    %63 = vmatpush1.msra.mxu0 %v46
    %64 = vmatprep.subr.mxu0 0.0
    %65 = vmatpush1.msra.mxu0 %v47
    %66 = vmatprep.subr.mxu0 0.0
    %67 = vmatpush1.msra.mxu0 %v48
    %68 = vmatprep.subr.mxu0 0.0
    %69 = vmatpush1.msra.mxu0 %v49
    %70 = vmatprep.subr.mxu0 0.0
    %71 = vmatpush1.msra.mxu0 %v50
    %72 = vmatprep.subr.mxu0 0.0
    %73 = vmatpush1.msra.mxu0 %v51
    %74 = vmatprep.subr.mxu0 0.0
    %75 = vmatpush1.msra.mxu0 %v52
    %76 = vmatprep.subr.mxu0 0.0
    %77 = vmatpush1.msra.mxu0 %v53
    %78 = vmatprep.subr.mxu0 0.0
    %79 = vmatpush1.msra.mxu0 %v54
    %80 = vmatprep.subr.mxu0 0.0
    %81 = vmatpush1.msra.mxu0 %v55
    %82 = vmatprep.subr.mxu0 0.0
    %83 = vmatpush1.msra.mxu0 %v56
    %84 = vmatprep.subr.mxu0 0.0
    %85 = vmatpush1.msra.mxu0 %v57
    %86 = vmatprep.subr.mxu0 0.0
    %87 = vmatpush1.msra.mxu0 %v58
    %88 = vmatprep.subr.mxu0 0.0
    %89 = vmatpush1.msra.mxu0 %v59
    %90 = vmatprep.subr.mxu0 0.0
    %91 = vmatpush1.msra.mxu0 %v60
    %92 = vmatprep.subr.mxu0 0.0
    %93 = vmatpush1.msra.mxu0 %v61
    %94 = vmatprep.subr.mxu0 0.0
    %95 = vmatpush1.msra.mxu0 0.0
    %96 = vmatprep.subr.mxu0 0.0
    %97 = vmatpush1.msra.mxu0 0.0
    %98 = vmatprep.subr.mxu0 0.0
    %99 = vmatpush1.msra.mxu0 0.0
    %100 = vmatprep.subr.mxu0 0.0
    %101 = vmatpush1.msra.mxu0 0.0
    %102 = vmatprep.subr.mxu0 0.0
    %103 = vmatpush1.msra.mxu0 0.0
    %104 = vmatprep.subr.mxu0 0.0
    %105 = vmatpush1.msra.mxu0 0.0
    %106 = vmatprep.subr.mxu0 0.0
    %107 = vmatpush1.msra.mxu0 0.0
    %108 = vmatprep.subr.mxu0 0.0
    %109 = vmatpush1.msra.mxu0 0.0
    %110 = vmatprep.subr.mxu0 0.0
    %111 = vmatpush1.msra.mxu0 0.0
    %112 = vmatprep.subr.mxu0 0.0
    %113 = vmatpush1.msra.mxu0 0.0
    %114 = vmatprep.subr.mxu0 0.0
    %115 = vmatpush1.msra.mxu0 0.0
    %116 = vmatprep.subr.mxu0 0.0
    %117 = vmatpush1.msra.mxu0 0.0
    %118 = vmatprep.subr.mxu0 0.0
    %119 = vmatpush1.msra.mxu0 0.0
    %120 = vmatprep.subr.mxu0 0.0
    %121 = vmatpush1.msra.mxu0 0.0
    %122 = vmatprep.subr.mxu0 0.0
    %123 = vmatpush1.msra.mxu0 0.0
    %124 = vmatprep.subr.mxu0 0.0
    %125 = vmatpush1.msra.mxu0 0.0
    %126 = vmatprep.mubr.f32.mxu0 0.0
    %127 = vmatmul.mubr.f32.gmra.mrb[0].mxu0 %v42
    %v128 = vpop.f32.mrb[0].mxu0
    %v129 = vadd.f32 0.0, %v128
    %v130 = vpop.f32.mrb[0].mxu0
    %131 = vmatprep.mubr.f32.mxu0 0.0
    %132 = vmatmul.mubr.f32.gmra.mrb[0].mxu0 %v43
    %v133 = vpop.f32.mrb[0].mxu0
    %v134 = vadd.f32 0.0, %v133
    %v135 = vpop.f32.mrb[0].mxu0
    %136 = vmatprep.mubr.f32.mxu0 0.0
    %137 = vmatmul.mubr.f32.gmra.mrb[0].mxu0 %v44
    %v138 = vpop.f32.mrb[0].mxu0
    %v139 = vadd.f32 0.0, %v138
    %v140 = vpop.f32.mrb[0].mxu0
    %141 = vmatprep.mubr.f32.mxu0 0.0
    %142 = vmatmul.mubr.f32.gmra.mrb[0].mxu0 %v45
    %v143 = vpop.f32.mrb[0].mxu0
    %v144 = vadd.f32 0.0, %v143
    %v145 = vpop.f32.mrb[0].mxu0
    %146 = vdwg.mxu0
    %s147 = sld [smem:[#allocation3]]
    %v148 = vstv %s147
    %v149 = vmul.f32 %v148, %v129
    %v150 = vmul.f32 %v148, %v134
    %v151 = vmul.f32 %v148, %v139
    %v152 = vmul.f32 %v148, %v144
    %153 = vst [vmem:[#allocation9] sm:$0xff] %v149
    %154 = vst [vmem:[#allocation9 + $0x8] sm:$0xff] %v150
    %155 = vst [vmem:[#allocation9 + $0x10] sm:$0xff] %v151
    %156 = vst [vmem:[#allocation9 + $0x18] sm:$0xff] %v152
    // Predicated region
    $region18: #{tpu_custom_call.1} parent=1 // pred_check
      _
    $region19: #{tpu_custom_call.1} parent=1 // pred_check_branch
      %158 = sbr.rel (0) target = $region21
    $region20: #{tpu_custom_call.1} parent=1 // pred_region
      %s160 = ssub.s32 512, 512
      %161 = vsyncadd [#allocation6], %s160
      %s162 = sshll.u32 [#allocation9], 4
      %s163 = int_to_ptr.vmem [resolvable:$true] %s162
      %168 = dma.vmem_to_hbm [thread:$0]  %s163, 512, %s3, [#allocation6], 128, 128, 8
    $region21: #{tpu_custom_call.1} parent=1 // pred_fallthru
      _
    // Predicated region
    $region22: #{tpu_custom_call.1} parent=1 // pred_check
      _
    $region23: #{tpu_custom_call.1} parent=1 // pred_check_branch
      %170 = sbr.rel (0) target = $region25
    $region24: #{tpu_custom_call.1} parent=1 // pred_region
      %171 = dma.done [#allocation6], 512
    $region25: #{tpu_custom_call.1} parent=1 // pred_fallthru
      _
    %172 = vsyncpa [#allocation5], 1
    %173 = vsyncpa [#allocation8], 1
    %174 = vsyncpa [#allocation6], 1

</llo_original>
